<compile_context>
chip_gen: v7x
topology: tpu7x:2x2x1
jax: 0.10.0
libtpu: 0.0.40
codegen_flags: <defaults>
</compile_context>

<pallas_src>
import jax
import jax.numpy as jnp
from jax import lax
from jax.experimental import pallas as pl
from jax.experimental.pallas import tpu as pltpu

IN_FEATURES = 10
OUT_FEATURES = 2

# dot(W, x^T): contract the last dim of both operands (transposed-RHS matmul,
# same dimension numbers the TPU flash-attention kernel uses for q @ k^T).
_NT_DIM_NUMBERS = (((1,), (1,)), ((), ()))


def linear_kernel(x_ref, w_ref, b_ref, o_ref):
    # x_ref: [TB, IN]   streamed batch tile
    # w_ref: [OUT, IN]  resident weight (PyTorch [out, in] layout)
    # b_ref: [OUT, 1]   resident bias
    # o_ref: [OUT, TB]  lane-dense transposed output tile
    acc = lax.dot_general(
        w_ref[...], x_ref[...],
        dimension_numbers=_NT_DIM_NUMBERS,
        preferred_element_type=jnp.float32,
    )  # [OUT, TB] = W @ x^T, f32 accumulate on the MXU
    o_ref[...] = (acc + b_ref[...]).astype(o_ref.dtype)


def _round_up(n, m):
    return ((n + m - 1) // m) * m


def mock_model_forward(x, weight, bias, *, block_rows=1024):
    """Forward of MockModel: y = x @ weight.T + bias.

    x:      [B, 10] float32
    weight: [2, 10] float32 (PyTorch nn.Linear layout [out, in])
    bias:   [2]     float32
    returns [B, 2]  float32
    """
    B, K = x.shape
    assert K == IN_FEATURES and weight.shape == (OUT_FEATURES, IN_FEATURES)

    # Batch tile: multiple of 128 so the transposed output tile is lane-dense
    # and the x block's second-minor dim satisfies the (8, 128) rule.
    tb = min(_round_up(block_rows, 128), _round_up(B, 128))
    b_pad = _round_up(B, tb)
    if b_pad != B:
        # Zero-padded rows produce bias-only outputs; sliced off below.
        x = jnp.pad(x, ((0, b_pad - B), (0, 0)))

    grid = (b_pad // tb,)
    b2d = bias.reshape(OUT_FEATURES, 1)

    cost = pl.CostEstimate(
        flops=2 * b_pad * IN_FEATURES * OUT_FEATURES,
        transcendentals=0,
        bytes_accessed=4 * (b_pad * IN_FEATURES
                            + OUT_FEATURES * IN_FEATURES
                            + OUT_FEATURES
                            + OUT_FEATURES * b_pad),
    )

    y_t = pl.pallas_call(
        linear_kernel,
        out_shape=jax.ShapeDtypeStruct((OUT_FEATURES, b_pad), x.dtype),
        grid_spec=pl.GridSpec(
            grid=grid,
            in_specs=[
                # x streamed tile-by-tile along the batch axis (pipelined).
                pl.BlockSpec((tb, IN_FEATURES), lambda i: (i, 0)),
                # weight / bias are grid-invariant residents (DMA'd once).
                pl.BlockSpec((OUT_FEATURES, IN_FEATURES), lambda i: (0, 0)),
                pl.BlockSpec((OUT_FEATURES, 1), lambda i: (0, 0)),
            ],
            out_specs=pl.BlockSpec((OUT_FEATURES, tb), lambda i: (0, i)),
        ),
        compiler_params=pltpu.CompilerParams(
            # Batch tiles are independent -> shard across v7x's 2 TensorCores.
            dimension_semantics=("parallel",),
        ),
        cost_estimate=cost,
    )(x, weight, b2d)

    # Cheap [2, B_pad] -> [B, 2] transpose of the narrow result in plain XLA.
    return y_t.T[:B]


if __name__ == "__main__":
    key = jax.random.PRNGKey(0)
    k_x, k_w, k_b, k_x2 = jax.random.split(key, 4)

    # Deterministic parameter init (mimics torch.nn.Linear's uniform init).
    bound = 1.0 / (IN_FEATURES ** 0.5)
    weight = jax.random.uniform(
        k_w, (OUT_FEATURES, IN_FEATURES), jnp.float32, -bound, bound)
    bias = jax.random.uniform(k_b, (OUT_FEATURES,), jnp.float32, -bound, bound)

    # Small case (single tile).
    batch = 8
    x = jax.random.normal(k_x, (batch, IN_FEATURES), jnp.float32)
    out = mock_model_forward(x, weight, bias)
    jax.block_until_ready(out)
    ref = x @ weight.T + bias
    assert out.shape == (batch, OUT_FEATURES)
    assert jnp.allclose(out, ref, atol=1e-5, rtol=1e-5)

    # Multi-tile case: non-multiple-of-tile batch exercises padding + grid > 1.
    batch2 = 300
    x2 = jax.random.normal(k_x2, (batch2, IN_FEATURES), jnp.float32)
    out2 = mock_model_forward(x2, weight, bias, block_rows=128)
    jax.block_until_ready(out2)
    ref2 = x2 @ weight.T + bias
    assert out2.shape == (batch2, OUT_FEATURES)
    assert jnp.allclose(out2, ref2, atol=1e-5, rtol=1e-5)

    print("KERNEL_OK")
</pallas_src>

<mosaic_0001>
module attributes {stable_mosaic.version = 11 : i64} {
  func.func @linear_kernel(%arg0: i32, %arg1: memref<128x10xf32, #tpu.memory_space<vmem>>, %arg2: memref<2x10xf32, #tpu.memory_space<vmem>>, %arg3: memref<2x1xf32, #tpu.memory_space<vmem>>, %arg4: memref<2x128xf32, #tpu.memory_space<vmem>>) attributes {dimension_semantics = [#tpu.dimension_semantics<parallel>], iteration_bounds = array<i64: 1>, scalar_prefetch = 0 : i64, scratch_operands = 0 : i64, tpu.core_type = #tpu.core_type<tc>, window_params = [{transform_indices = @transform_0, window_bounds = array<i64: 128, 10>}, {pipeline_mode = #tpu.pipeline_mode<synchronous>, transform_indices = @transform_1, window_bounds = array<i64: 2, 10>}, {pipeline_mode = #tpu.pipeline_mode<synchronous>, transform_indices = @transform_2, window_bounds = array<i64: 2, 1>}, {transform_indices = @transform_3, window_bounds = array<i64: 2, 128>}]} {
    %c0 = arith.constant 0 : index
    %c0_0 = arith.constant 0 : index
    %0 = vector.load %arg2[%c0, %c0_0] : memref<2x10xf32, #tpu.memory_space<vmem>>, vector<2x10xf32>
    %c0_1 = arith.constant 0 : index
    %c0_2 = arith.constant 0 : index
    %1 = vector.load %arg1[%c0_1, %c0_2] : memref<128x10xf32, #tpu.memory_space<vmem>>, vector<128x10xf32>
    %cst = arith.constant dense<0.000000e+00> : vector<2x128xf32>
    %2 = tpu.matmul %0, %1, %cst {dimension_numbers = #tpu.dot_dimension_numbers<[1], [1], [0], [0], [0, 0, 1, 0], [], []>} : vector<2x10xf32>, vector<128x10xf32>, vector<2x128xf32> -> vector<2x128xf32>
    %c0_3 = arith.constant 0 : index
    %c0_4 = arith.constant 0 : index
    %3 = vector.load %arg3[%c0_3, %c0_4] : memref<2x1xf32, #tpu.memory_space<vmem>>, vector<2x1xf32>
    %4 = vector.broadcast %3 : vector<2x1xf32> to vector<2x128xf32>
    %5 = arith.addf %2, %4 : vector<2x128xf32>
    %c0_5 = arith.constant 0 : index
    %c0_6 = arith.constant 0 : index
    %6 = vector.load %arg4[%c0_5, %c0_6] : memref<2x128xf32, #tpu.memory_space<vmem>>, vector<2x128xf32>
    tpu.vector_store %arg4[%c0_5, %c0_6], %5 {strides = array<i32>} : memref<2x128xf32, #tpu.memory_space<vmem>>, vector<2x128xf32>,
    return
  }
  func.func @transform_0(%arg0: i32) -> (i32, i32) {
    %c0_i32 = arith.constant 0 : i32
    %c0_i32_0 = arith.constant 0 : i32
    return %arg0, %c0_i32 : i32, i32
  }
  func.func @transform_1(%arg0: i32) -> (i32, i32) {
    %c0_i32 = arith.constant 0 : i32
    %c0_i32_0 = arith.constant 0 : i32
    %c0_i32_1 = arith.constant 0 : i32
    return %c0_i32, %c0_i32_0 : i32, i32
  }
  func.func @transform_2(%arg0: i32) -> (i32, i32) {
    %c0_i32 = arith.constant 0 : i32
    %c0_i32_0 = arith.constant 0 : i32
    %c0_i32_1 = arith.constant 0 : i32
    return %c0_i32, %c0_i32_0 : i32, i32
  }
  func.func @transform_3(%arg0: i32) -> (i32, i32) {
    %c0_i32 = arith.constant 0 : i32
    %c0_i32_0 = arith.constant 0 : i32
    return %c0_i32, %arg0 : i32, i32
  }
}

</mosaic_0001>

<llo_original>
// kernel: tpu_custom_call.1
$region0: #{tpu_custom_call.1}
  #allocation0 [shape = 'u32[]', space=smem, size = 0x4, offset = 0x4, fixed_abs, tag = 'smem constant byte address 0x4 - core index']
  #allocation1 [shape = 'u32[144,128]{1,0:T(1,128)}', space=vmem, size = 0x12000, scoped, tag = 'internal scratch']
  %s0 = inlined_call_operand.vmem [shape: f32[128,10], index: 0, kind: input, shape index: {}]
  %s1 = inlined_call_operand.vmem [shape: f32[2,10], index: 1, kind: input, shape index: {}]
  %s2 = inlined_call_operand.vmem [shape: f32[2,1], index: 2, kind: input, shape index: {}]
  %s3 = inlined_call_operand.hbm [shape: f32[2,128], index: 3, kind: output, shape index: {}]
  %s4 = sld [smem:[#allocation0]]
  $region22: #{tpu_custom_call.1} parent=0
    _
  %s6 = ssub.s32 1, %s4
  %s7 = scalar_select 0, %s6, %s4
  $region1: #{tpu_custom_call.1} parent=0
    #allocation2 [shape = 'u8[1024]{0}', space=vmem, size = 0x400, scoped, tag = 'output window, operand 0, single buffered']
    #allocation3 [shape = 's32[1]{0}', space=sflag, size = 0x4, scoped, tag = 'scoped memory for tpu_custom_call.1']
    %8 = vsyncpa [#allocation3], 0
    // Predicated region
    $region2: #{tpu_custom_call.1} parent=1 // pred_check
      _
    $region3: #{tpu_custom_call.1} parent=1 // pred_check_branch
      %10 = sbr.rel (0) target = $region5
    $region4: #{tpu_custom_call.1} parent=1 // pred_region
      _
    $region5: #{tpu_custom_call.1} parent=1 // pred_fallthru
      _
    // Predicated region
    $region6: #{tpu_custom_call.1} parent=1 // pred_check
      _
    $region7: #{tpu_custom_call.1} parent=1 // pred_check_branch
      %12 = sbr.rel (0) target = $region9
    $region8: #{tpu_custom_call.1} parent=1 // pred_region
      _
    $region9: #{tpu_custom_call.1} parent=1 // pred_fallthru
      _
    // Predicated region
    $region10: #{tpu_custom_call.1} parent=1 // pred_check
      _
    $region11: #{tpu_custom_call.1} parent=1 // pred_check_branch
      %14 = sbr.rel (0) target = $region13
    $region12: #{tpu_custom_call.1} parent=1 // pred_region
      _
    $region13: #{tpu_custom_call.1} parent=1 // pred_fallthru
      _
    %v15 = vld [vmem:[%s1] sm:$0x3]
    %v16 = vld [vmem:[%s0] sm:$0xff]
    %v17 = vld [vmem:[%s0 + $0x8] sm:$0xff]
    %v18 = vld [vmem:[%s0 + $0x10] sm:$0xff]
    %v19 = vld [vmem:[%s0 + $0x18] sm:$0xff]
    %v20 = vld [vmem:[%s0 + $0x20] sm:$0xff]
    %v21 = vld [vmem:[%s0 + $0x28] sm:$0xff]
    %v22 = vld [vmem:[%s0 + $0x30] sm:$0xff]
    %v23 = vld [vmem:[%s0 + $0x38] sm:$0xff]
    %v24 = vld [vmem:[%s0 + $0x40] sm:$0xff]
    %v25 = vld [vmem:[%s0 + $0x48] sm:$0xff]
    %v26 = vld [vmem:[%s0 + $0x50] sm:$0xff]
    %v27 = vld [vmem:[%s0 + $0x58] sm:$0xff]
    %v28 = vld [vmem:[%s0 + $0x60] sm:$0xff]
    %v29 = vld [vmem:[%s0 + $0x68] sm:$0xff]
    %v30 = vld [vmem:[%s0 + $0x70] sm:$0xff]
    %v31 = vld [vmem:[%s0 + $0x78] sm:$0xff]
    %v32 = vld [vmem:[%s2] sm:$0x3]
    %34 = vset.pattern.permute.xlu0 0
    %35 = vperm.xlu0 %34, %v32
    %v36 = vpop.permute.xlu0 %35
    %vm38 = vcmask 80896
    %v40 = vsel %vm38, %v15, 0
    %v43 = vsel %vm38, %v16, 0
    %v46 = vsel %vm38, %v17, 0
    %v49 = vsel %vm38, %v18, 0
    %v52 = vsel %vm38, %v19, 0
    %v55 = vsel %vm38, %v20, 0
    %v58 = vsel %vm38, %v21, 0
    %v61 = vsel %vm38, %v22, 0
    %v64 = vsel %vm38, %v23, 0
    %v67 = vsel %vm38, %v24, 0
    %v70 = vsel %vm38, %v25, 0
    %v73 = vsel %vm38, %v26, 0
    %v76 = vsel %vm38, %v27, 0
    %v79 = vsel %vm38, %v28, 0
    %v82 = vsel %vm38, %v29, 0
    %v85 = vsel %vm38, %v30, 0
    %v88 = vsel %vm38, %v31, 0
    %90 = vmatprep.subr.mxu0 0.0
    %91 = vmatpush1.xpose.msra.mxu0 %v43
    %92 = vmatprep.subr.mxu0 0.0
    %93 = vmatpush1.xpose.msra.mxu0 %v46
    %94 = vmatprep.subr.mxu0 0.0
    %95 = vmatpush1.xpose.msra.mxu0 %v49
    %96 = vmatprep.subr.mxu0 0.0
    %97 = vmatpush1.xpose.msra.mxu0 %v52
    %98 = vmatprep.subr.mxu0 0.0
    %99 = vmatpush1.xpose.msra.mxu0 %v55
    %100 = vmatprep.subr.mxu0 0.0
    %101 = vmatpush1.xpose.msra.mxu0 %v58
    %102 = vmatprep.subr.mxu0 0.0
    %103 = vmatpush1.xpose.msra.mxu0 %v61
    %104 = vmatprep.subr.mxu0 0.0
    %105 = vmatpush1.xpose.msra.mxu0 %v64
    %106 = vmatprep.subr.mxu0 0.0
    %107 = vmatpush1.xpose.msra.mxu0 %v67
    %108 = vmatprep.subr.mxu0 0.0
    %109 = vmatpush1.xpose.msra.mxu0 %v70
    %110 = vmatprep.subr.mxu0 0.0
    %111 = vmatpush1.xpose.msra.mxu0 %v73
    %112 = vmatprep.subr.mxu0 0.0
    %113 = vmatpush1.xpose.msra.mxu0 %v76
    %114 = vmatprep.subr.mxu0 0.0
    %115 = vmatpush1.xpose.msra.mxu0 %v79
    %116 = vmatprep.subr.mxu0 0.0
    %117 = vmatpush1.xpose.msra.mxu0 %v82
    %118 = vmatprep.subr.mxu0 0.0
    %119 = vmatpush1.xpose.msra.mxu0 %v85
    %120 = vmatprep.subr.mxu0 0.0
    %121 = vmatpush1.xpose.msra.mxu0 %v88
    %122 = vmatprep.subr.mxu0 0.0
    %123 = vmatpush1.xpose.msra.mxu0 0.0
    %124 = vmatprep.subr.mxu0 0.0
    %125 = vmatpush1.xpose.msra.mxu0 0.0
    %126 = vmatprep.subr.mxu0 0.0
    %127 = vmatpush1.xpose.msra.mxu0 0.0
    %128 = vmatprep.subr.mxu0 0.0
    %129 = vmatpush1.xpose.msra.mxu0 0.0
    %130 = vmatprep.subr.mxu0 0.0
    %131 = vmatpush1.xpose.msra.mxu0 0.0
    %132 = vmatprep.subr.mxu0 0.0
    %133 = vmatpush1.xpose.msra.mxu0 0.0
    %134 = vmatprep.subr.mxu0 0.0
    %135 = vmatpush1.xpose.msra.mxu0 0.0
    %136 = vmatprep.subr.mxu0 0.0
    %137 = vmatpush1.xpose.msra.mxu0 0.0
    %138 = vmatprep.subr.mxu0 0.0
    %139 = vmatpush1.xpose.msra.mxu0 0.0
    %140 = vmatprep.subr.mxu0 0.0
    %141 = vmatpush1.xpose.msra.mxu0 0.0
    %142 = vmatprep.subr.mxu0 0.0
    %143 = vmatpush1.xpose.msra.mxu0 0.0
    %144 = vmatprep.subr.mxu0 0.0
    %145 = vmatpush1.xpose.msra.mxu0 0.0
    %146 = vmatprep.subr.mxu0 0.0
    %147 = vmatpush1.xpose.msra.mxu0 0.0
    %148 = vmatprep.subr.mxu0 0.0
    %149 = vmatpush1.xpose.msra.mxu0 0.0
    %150 = vmatprep.subr.mxu0 0.0
    %151 = vmatpush1.xpose.msra.mxu0 0.0
    %152 = vmatprep.subr.mxu0 0.0
    %153 = vmatpush1.xpose.msra.mxu0 0.0
    %154 = vmatprep.mubr.f32.mxu0 0.0
    %155 = vmatmul.mubr.f32.gmra.mrb[0].mxu0 %v40
    %v156 = vpop.f32.mrb[0].mxu0
    %v157 = vadd.f32 %v36, %v156
    %v158 = vpop.f32.mrb[0].mxu0
    %159 = vdwg.mxu0
    %160 = vst [vmem:[#allocation2] sm:$0x3] %v157
    // Predicated region
    $region14: #{tpu_custom_call.1} parent=1 // pred_check
      _
    $region15: #{tpu_custom_call.1} parent=1 // pred_check_branch
      %162 = sbr.rel (0) target = $region17
    $region16: #{tpu_custom_call.1} parent=1 // pred_region
      %s164 = ssub.s32 32, 32
      %165 = vsyncadd [#allocation3], %s164
      %s167 = sshll.u32 [#allocation2], 4
      %s168 = int_to_ptr.vmem [resolvable:$true] %s167
      %170 = dma.vmem_to_hbm [thread:$0]  %s168, 32, %s3, [#allocation3]
    $region17: #{tpu_custom_call.1} parent=1 // pred_fallthru
      _
    // Predicated region
    $region18: #{tpu_custom_call.1} parent=1 // pred_check
      _
    $region19: #{tpu_custom_call.1} parent=1 // pred_check_branch
      %172 = sbr.rel (0) target = $region21
    $region20: #{tpu_custom_call.1} parent=1 // pred_region
      %173 = dma.done [#allocation3], 32
    $region21: #{tpu_custom_call.1} parent=1 // pred_fallthru
      _
    %174 = vsyncpa [#allocation3], 1

</llo_original>
